<compile_context>
chip_gen: v6e
topology: v6e:2x2x1
jax: 0.10.0
libtpu: 0.0.40
codegen_flags: <defaults>
</compile_context>

<pallas_src>
import jax
import jax.numpy as jnp
from jax.experimental import pallas as pl
from jax.experimental.pallas import tpu as pltpu

IN_FEATURES = 80
LAYER_COUNT = 5            # config['CLASSIFICATION_HEAD'].get('LAYER_COUNT', 5)
OUTPUT_FEATURES = 16       # config['CLASSIFICATION_HEAD']['OUTPUT_FEATURES']
N_HIDDEN = LAYER_COUNT - 1

MAX_TB = 4096              # batch tile; ~12-15 MiB live VMEM worst case at this size


def _round_up(x, m):
    return ((x + m - 1) // m) * m


def mlp_kernel(x_ref, wh_ref, bh_ref, wo_ref, bo_ref, o_ref):
    """Fused MLP forward on one batch tile.

    x_ref:  (TB, 80)            bf16 input features
    wh_ref: (N_HIDDEN, 80, 80)  bf16 hidden weights, [in, out] layout
    bh_ref: (N_HIDDEN, 1, 80)   f32 hidden biases
    wo_ref: (80, 16)            bf16 output weight, [in, out] layout
    bo_ref: (1, 16)             f32 output bias
    o_ref:  (TB, 16)            f32 output logits
    """
    h = x_ref[...]                                     # bf16
    # Small fixed layer count -> unrolled at trace time (static indices).
    for l in range(N_HIDDEN):
        acc = jnp.dot(h, wh_ref[l], preferred_element_type=jnp.float32)
        h = jnp.maximum(acc + bh_ref[l], 0.0).astype(jnp.bfloat16)  # bias+ReLU in f32
    o_ref[...] = (jnp.dot(h, wo_ref[...], preferred_element_type=jnp.float32)
                  + bo_ref[...])


def prepare_kernel_params(params):
    """Cast weights to bf16 (MXU inputs); keep biases in f32. No lane padding —
    full-dim blocks are legal and Mosaic pads internally at zero HBM cost."""
    wh, bh, wo, bo = params
    return (wh.astype(jnp.bfloat16),
            bh.astype(jnp.float32),
            wo.astype(jnp.bfloat16),
            bo.astype(jnp.float32))


def mlp_forward(input_images, input_features, kernel_params):
    """Wrapper mirroring MLPModel.forward: returns (outputs, None)."""
    del input_images  # unused by the PyTorch module as well
    wh, bh, wo, bo = kernel_params
    B = input_features.shape[0]

    # Pad batch only to the sublane width; tile is capped, grid is ragged-aware.
    B_pad = _round_up(B, 8)
    TB = min(MAX_TB, B_pad)
    grid = (pl.cdiv(B_pad, TB),)

    # bf16 input DMA (160 B/row); batch-pad rows are zeros and sliced off below.
    x = jnp.pad(input_features, ((0, B_pad - B), (0, 0))).astype(jnp.bfloat16)

    out = pl.pallas_call(
        mlp_kernel,
        out_shape=jax.ShapeDtypeStruct((B_pad, OUTPUT_FEATURES), jnp.float32),
        grid=grid,
        in_specs=[
            pl.BlockSpec((TB, IN_FEATURES), lambda i: (i, 0)),
            # Weights/biases: same block every step -> DMA'd once, resident in VMEM.
            pl.BlockSpec((N_HIDDEN, IN_FEATURES, IN_FEATURES), lambda i: (0, 0, 0)),
            pl.BlockSpec((N_HIDDEN, 1, IN_FEATURES), lambda i: (0, 0, 0)),
            pl.BlockSpec((IN_FEATURES, OUTPUT_FEATURES), lambda i: (0, 0)),
            pl.BlockSpec((1, OUTPUT_FEATURES), lambda i: (0, 0)),
        ],
        out_specs=pl.BlockSpec((TB, OUTPUT_FEATURES), lambda i: (i, 0)),
        compiler_params=pltpu.CompilerParams(
            dimension_semantics=("parallel",),
            vmem_limit_bytes=32 * 1024 * 1024),
    )(x, wh, bh, wo, bo)

    # TODO(synk): for a latency-critical tiny-batch path, consider fusing this op
    # into the caller instead (launch overhead dominates there, not weight DMA).
    return out[:B], None


def init_params(key):
    """Deterministic f32 parameter init (same shapes/layout as torch.nn.Linear,
    stored transposed as [in, out])."""
    keys = jax.random.split(key, 2 * N_HIDDEN + 2)
    bound = 1.0 / (IN_FEATURES ** 0.5)
    wh = jnp.stack([
        jax.random.uniform(keys[2 * l], (IN_FEATURES, IN_FEATURES),
                           jnp.float32, -bound, bound)
        for l in range(N_HIDDEN)
    ])
    bh = jnp.stack([
        jax.random.uniform(keys[2 * l + 1], (1, IN_FEATURES),
                           jnp.float32, -bound, bound)
        for l in range(N_HIDDEN)
    ])
    wo = jax.random.uniform(keys[-2], (IN_FEATURES, OUTPUT_FEATURES),
                            jnp.float32, -bound, bound)
    bo = jax.random.uniform(keys[-1], (1, OUTPUT_FEATURES),
                            jnp.float32, -bound, bound)
    return wh, bh, wo, bo


def mlp_reference(input_features, params):
    """Plain-JAX reference. Inputs/weights are bf16-rounded (matching what the
    kernel actually multiplies) so the comparison isolates activation rounding."""
    wh, bh, wo, bo = params
    h = input_features.astype(jnp.bfloat16).astype(jnp.float32)
    for l in range(N_HIDDEN):
        w = wh[l].astype(jnp.bfloat16).astype(jnp.float32)
        h = jnp.maximum(h @ w + bh[l], 0.0)
    wo_q = wo.astype(jnp.bfloat16).astype(jnp.float32)
    return h @ wo_q + bo


if __name__ == "__main__":
    key = jax.random.PRNGKey(0)
    k_img, k_feat, k_par = jax.random.split(key, 3)

    batch = 8
    # input_images: NCHW, unused by the forward pass (kept for API parity)
    input_images = jax.random.normal(k_img, (batch, 3, 16, 16), jnp.float32)
    input_features = jax.random.normal(k_feat, (batch, IN_FEATURES), jnp.float32)

    params = init_params(k_par)
    kparams = prepare_kernel_params(params)

    outputs, aux = mlp_forward(input_images, input_features, kparams)
    outputs = jax.block_until_ready(outputs)

    assert aux is None
    assert outputs.shape == (batch, OUTPUT_FEATURES)

    ref = mlp_reference(input_features, params)
    assert jnp.allclose(outputs, ref, atol=2e-2, rtol=2e-2), "mismatch vs reference"

    print("KERNEL_OK")
</pallas_src>

<mosaic_0001>
module attributes {stable_mosaic.version = 11 : i64} {
  func.func @mlp_kernel(%arg0: i32, %arg1: memref<8x80xbf16, #tpu.memory_space<vmem>>, %arg2: memref<4x80x80xbf16, #tpu.memory_space<vmem>>, %arg3: memref<4x1x80xf32, #tpu.memory_space<vmem>>, %arg4: memref<80x16xbf16, #tpu.memory_space<vmem>>, %arg5: memref<1x16xf32, #tpu.memory_space<vmem>>, %arg6: memref<8x16xf32, #tpu.memory_space<vmem>>) attributes {dimension_semantics = [#tpu.dimension_semantics<parallel>], iteration_bounds = array<i64: 1>, scalar_prefetch = 0 : i64, scratch_operands = 0 : i64, tpu.core_type = #tpu.core_type<tc>, window_params = [{transform_indices = @transform_0, window_bounds = array<i64: 8, 80>}, {pipeline_mode = #tpu.pipeline_mode<synchronous>, transform_indices = @transform_1, window_bounds = array<i64: 4, 80, 80>}, {pipeline_mode = #tpu.pipeline_mode<synchronous>, transform_indices = @transform_2, window_bounds = array<i64: 4, 1, 80>}, {pipeline_mode = #tpu.pipeline_mode<synchronous>, transform_indices = @transform_3, window_bounds = array<i64: 80, 16>}, {pipeline_mode = #tpu.pipeline_mode<synchronous>, transform_indices = @transform_4, window_bounds = array<i64: 1, 16>}, {transform_indices = @transform_5, window_bounds = array<i64: 8, 16>}]} {
    %c0 = arith.constant 0 : index
    %c0_0 = arith.constant 0 : index
    %0 = vector.load %arg1[%c0, %c0_0] : memref<8x80xbf16, #tpu.memory_space<vmem>>, vector<8x80xbf16>
    %c0_1 = arith.constant 0 : index
    %c0_2 = arith.constant 0 : index
    %c0_3 = arith.constant 0 : index
    %1 = vector.load %arg2[%c0_1, %c0_2, %c0_3] : memref<4x80x80xbf16, #tpu.memory_space<vmem>>, vector<1x80x80xbf16>
    %2 = vector.shape_cast %1 : vector<1x80x80xbf16> to vector<80x80xbf16>
    %cst = arith.constant dense<0.000000e+00> : vector<8x80xf32>
    %3 = tpu.matmul %0, %2, %cst {dimension_numbers = #tpu.dot_dimension_numbers<[1], [0], [0], [1], [0, 0, 1, 1], [], []>} : vector<8x80xbf16>, vector<80x80xbf16>, vector<8x80xf32> -> vector<8x80xf32>
    %c0_4 = arith.constant 0 : index
    %c0_5 = arith.constant 0 : index
    %c0_6 = arith.constant 0 : index
    %4 = vector.load %arg3[%c0_4, %c0_5, %c0_6] : memref<4x1x80xf32, #tpu.memory_space<vmem>>, vector<1x1x80xf32>
    %5 = vector.shape_cast %4 : vector<1x1x80xf32> to vector<1x80xf32>
    %6 = vector.broadcast %5 : vector<1x80xf32> to vector<8x80xf32>
    %7 = arith.addf %3, %6 : vector<8x80xf32>
    %cst_7 = arith.constant 0.000000e+00 : f32
    %8 = vector.broadcast %cst_7 : f32 to vector<8x80xf32>
    %9 = arith.maximumf %7, %8 : vector<8x80xf32>
    %10 = arith.truncf %9 : vector<8x80xf32> to vector<8x80xbf16>
    %c1 = arith.constant 1 : index
    %c0_8 = arith.constant 0 : index
    %c0_9 = arith.constant 0 : index
    %11 = vector.load %arg2[%c1, %c0_8, %c0_9] : memref<4x80x80xbf16, #tpu.memory_space<vmem>>, vector<1x80x80xbf16>
    %12 = vector.shape_cast %11 : vector<1x80x80xbf16> to vector<80x80xbf16>
    %cst_10 = arith.constant dense<0.000000e+00> : vector<8x80xf32>
    %13 = tpu.matmul %10, %12, %cst_10 {dimension_numbers = #tpu.dot_dimension_numbers<[1], [0], [0], [1], [0, 0, 1, 1], [], []>} : vector<8x80xbf16>, vector<80x80xbf16>, vector<8x80xf32> -> vector<8x80xf32>
    %c1_11 = arith.constant 1 : index
    %c0_12 = arith.constant 0 : index
    %c0_13 = arith.constant 0 : index
    %14 = vector.load %arg3[%c1_11, %c0_12, %c0_13] : memref<4x1x80xf32, #tpu.memory_space<vmem>>, vector<1x1x80xf32>
    %15 = vector.shape_cast %14 : vector<1x1x80xf32> to vector<1x80xf32>
    %16 = vector.broadcast %15 : vector<1x80xf32> to vector<8x80xf32>
    %17 = arith.addf %13, %16 : vector<8x80xf32>
    %cst_14 = arith.constant 0.000000e+00 : f32
    %18 = vector.broadcast %cst_14 : f32 to vector<8x80xf32>
    %19 = arith.maximumf %17, %18 : vector<8x80xf32>
    %20 = arith.truncf %19 : vector<8x80xf32> to vector<8x80xbf16>
    %c2 = arith.constant 2 : index
    %c0_15 = arith.constant 0 : index
    %c0_16 = arith.constant 0 : index
    %21 = vector.load %arg2[%c2, %c0_15, %c0_16] : memref<4x80x80xbf16, #tpu.memory_space<vmem>>, vector<1x80x80xbf16>
    %22 = vector.shape_cast %21 : vector<1x80x80xbf16> to vector<80x80xbf16>
    %cst_17 = arith.constant dense<0.000000e+00> : vector<8x80xf32>
    %23 = tpu.matmul %20, %22, %cst_17 {dimension_numbers = #tpu.dot_dimension_numbers<[1], [0], [0], [1], [0, 0, 1, 1], [], []>} : vector<8x80xbf16>, vector<80x80xbf16>, vector<8x80xf32> -> vector<8x80xf32>
    %c2_18 = arith.constant 2 : index
    %c0_19 = arith.constant 0 : index
    %c0_20 = arith.constant 0 : index
    %24 = vector.load %arg3[%c2_18, %c0_19, %c0_20] : memref<4x1x80xf32, #tpu.memory_space<vmem>>, vector<1x1x80xf32>
    %25 = vector.shape_cast %24 : vector<1x1x80xf32> to vector<1x80xf32>
    %26 = vector.broadcast %25 : vector<1x80xf32> to vector<8x80xf32>
    %27 = arith.addf %23, %26 : vector<8x80xf32>
    %cst_21 = arith.constant 0.000000e+00 : f32
    %28 = vector.broadcast %cst_21 : f32 to vector<8x80xf32>
    %29 = arith.maximumf %27, %28 : vector<8x80xf32>
    %30 = arith.truncf %29 : vector<8x80xf32> to vector<8x80xbf16>
    %c3 = arith.constant 3 : index
    %c0_22 = arith.constant 0 : index
    %c0_23 = arith.constant 0 : index
    %31 = vector.load %arg2[%c3, %c0_22, %c0_23] : memref<4x80x80xbf16, #tpu.memory_space<vmem>>, vector<1x80x80xbf16>
    %32 = vector.shape_cast %31 : vector<1x80x80xbf16> to vector<80x80xbf16>
    %cst_24 = arith.constant dense<0.000000e+00> : vector<8x80xf32>
    %33 = tpu.matmul %30, %32, %cst_24 {dimension_numbers = #tpu.dot_dimension_numbers<[1], [0], [0], [1], [0, 0, 1, 1], [], []>} : vector<8x80xbf16>, vector<80x80xbf16>, vector<8x80xf32> -> vector<8x80xf32>
    %c3_25 = arith.constant 3 : index
    %c0_26 = arith.constant 0 : index
    %c0_27 = arith.constant 0 : index
    %34 = vector.load %arg3[%c3_25, %c0_26, %c0_27] : memref<4x1x80xf32, #tpu.memory_space<vmem>>, vector<1x1x80xf32>
    %35 = vector.shape_cast %34 : vector<1x1x80xf32> to vector<1x80xf32>
    %36 = vector.broadcast %35 : vector<1x80xf32> to vector<8x80xf32>
    %37 = arith.addf %33, %36 : vector<8x80xf32>
    %cst_28 = arith.constant 0.000000e+00 : f32
    %38 = vector.broadcast %cst_28 : f32 to vector<8x80xf32>
    %39 = arith.maximumf %37, %38 : vector<8x80xf32>
    %40 = arith.truncf %39 : vector<8x80xf32> to vector<8x80xbf16>
    %c0_29 = arith.constant 0 : index
    %c0_30 = arith.constant 0 : index
    %41 = vector.load %arg4[%c0_29, %c0_30] : memref<80x16xbf16, #tpu.memory_space<vmem>>, vector<80x16xbf16>
    %cst_31 = arith.constant dense<0.000000e+00> : vector<8x16xf32>
    %42 = tpu.matmul %40, %41, %cst_31 {dimension_numbers = #tpu.dot_dimension_numbers<[1], [0], [0], [1], [0, 0, 1, 1], [], []>} : vector<8x80xbf16>, vector<80x16xbf16>, vector<8x16xf32> -> vector<8x16xf32>
    %c0_32 = arith.constant 0 : index
    %c0_33 = arith.constant 0 : index
    %43 = vector.load %arg5[%c0_32, %c0_33] : memref<1x16xf32, #tpu.memory_space<vmem>>, vector<1x16xf32>
    %44 = vector.broadcast %43 : vector<1x16xf32> to vector<8x16xf32>
    %45 = arith.addf %42, %44 : vector<8x16xf32>
    %c0_34 = arith.constant 0 : index
    %c0_35 = arith.constant 0 : index
    %46 = vector.load %arg6[%c0_34, %c0_35] : memref<8x16xf32, #tpu.memory_space<vmem>>, vector<8x16xf32>
    tpu.vector_store %arg6[%c0_34, %c0_35], %45 {strides = array<i32>} : memref<8x16xf32, #tpu.memory_space<vmem>>, vector<8x16xf32>,
    return
  }
  func.func @transform_0(%arg0: i32) -> (i32, i32) {
    %c0_i32 = arith.constant 0 : i32
    %c0_i32_0 = arith.constant 0 : i32
    return %arg0, %c0_i32 : i32, i32
  }
  func.func @transform_1(%arg0: i32) -> (i32, i32, i32) {
    %c0_i32 = arith.constant 0 : i32
    %c0_i32_0 = arith.constant 0 : i32
    %c0_i32_1 = arith.constant 0 : i32
    %c0_i32_2 = arith.constant 0 : i32
    return %c0_i32, %c0_i32_0, %c0_i32_1 : i32, i32, i32
  }
  func.func @transform_2(%arg0: i32) -> (i32, i32, i32) {
    %c0_i32 = arith.constant 0 : i32
    %c0_i32_0 = arith.constant 0 : i32
    %c0_i32_1 = arith.constant 0 : i32
    %c0_i32_2 = arith.constant 0 : i32
    return %c0_i32, %c0_i32_0, %c0_i32_1 : i32, i32, i32
  }
  func.func @transform_3(%arg0: i32) -> (i32, i32) {
    %c0_i32 = arith.constant 0 : i32
    %c0_i32_0 = arith.constant 0 : i32
    %c0_i32_1 = arith.constant 0 : i32
    return %c0_i32, %c0_i32_0 : i32, i32
  }
  func.func @transform_4(%arg0: i32) -> (i32, i32) {
    %c0_i32 = arith.constant 0 : i32
    %c0_i32_0 = arith.constant 0 : i32
    %c0_i32_1 = arith.constant 0 : i32
    return %c0_i32, %c0_i32_0 : i32, i32
  }
  func.func @transform_5(%arg0: i32) -> (i32, i32) {
    %c0_i32 = arith.constant 0 : i32
    %c0_i32_0 = arith.constant 0 : i32
    return %arg0, %c0_i32 : i32, i32
  }
}

</mosaic_0001>

<llo_original>
// kernel: tpu_custom_call.1
$region0: #{tpu_custom_call.1}
  #allocation0 [shape = 'u32[]', space=smem, size = 0x4, offset = 0x4, fixed_abs, tag = 'smem constant byte address 0x4 - core index']
  #allocation1 [shape = 'u32[144,128]{1,0:T(1,128)}', space=vmem, size = 0x12000, scoped, tag = 'internal scratch']
  %s0 = inlined_call_operand.vmem [shape: bf16[8,80], index: 0, kind: input, shape index: {}]
  %s1 = inlined_call_operand.hbm [shape: bf16[4,80,80], index: 1, kind: input, shape index: {}]
  %s2 = inlined_call_operand.vmem [shape: f32[4,1,80], index: 2, kind: input, shape index: {}]
  %s3 = inlined_call_operand.vmem [shape: bf16[80,16], index: 3, kind: input, shape index: {}]
  %s4 = inlined_call_operand.vmem [shape: f32[1,16], index: 4, kind: input, shape index: {}]
  %s5 = inlined_call_operand.hbm [shape: f32[8,16], index: 5, kind: output, shape index: {}]
  %s6 = sld [smem:[#allocation0]]
  $region34: #{tpu_custom_call.1} parent=0
    _
  %s8 = ssub.s32 1, %s6
  %s9 = scalar_select 0, %s8, %s6
  $region1: #{tpu_custom_call.1} parent=0
    #allocation2 [shape = 'u8[81920]{0}', space=vmem, size = 0x14000, scoped, tag = 'input window, operand 1, single buffered']
    #allocation3 [shape = 's32[1]{0}', space=sflag, size = 0x4, scoped, tag = 'scoped memory for tpu_custom_call.1']
    #allocation4 [shape = 's32[1]{0}', space=sflag, size = 0x4, scoped, tag = 'scoped memory for tpu_custom_call.1']
    #allocation5 [shape = 'u8[4096]{0}', space=vmem, size = 0x1000, scoped, tag = 'output window, operand 0, single buffered']
    %10 = vsyncpa [#allocation3], 0
    %11 = vsyncpa [#allocation4], 0
    // Predicated region
    $region2: #{tpu_custom_call.1} parent=1 // pred_check
      _
    $region3: #{tpu_custom_call.1} parent=1 // pred_check_branch
      %13 = sbr.rel (0) target = $region5
    $region4: #{tpu_custom_call.1} parent=1 // pred_region
      _
    $region5: #{tpu_custom_call.1} parent=1 // pred_fallthru
      _
    // Predicated region
    $region6: #{tpu_custom_call.1} parent=1 // pred_check
      _
    $region7: #{tpu_custom_call.1} parent=1 // pred_check_branch
      %15 = sbr.rel (0) target = $region9
    $region8: #{tpu_custom_call.1} parent=1 // pred_region
      %s17 = ssub.s32 2560, 2560
      %18 = vsyncadd [#allocation3], %s17
      %s19 = sshll.u32 [#allocation2], 4
      %s20 = int_to_ptr.vmem [resolvable:$true] %s19
      %25 = dma.hbm_to_vmem [thread:$0]  %s1, 2560, %s20, [#allocation3], 64, 64, 4
    $region9: #{tpu_custom_call.1} parent=1 // pred_fallthru
      _
    // Predicated region
    $region10: #{tpu_custom_call.1} parent=1 // pred_check
      _
    $region11: #{tpu_custom_call.1} parent=1 // pred_check_branch
      %27 = sbr.rel (0) target = $region13
    $region12: #{tpu_custom_call.1} parent=1 // pred_region
      _
    $region13: #{tpu_custom_call.1} parent=1 // pred_fallthru
      _
    // Predicated region
    $region14: #{tpu_custom_call.1} parent=1 // pred_check
      _
    $region15: #{tpu_custom_call.1} parent=1 // pred_check_branch
      %29 = sbr.rel (0) target = $region17
    $region16: #{tpu_custom_call.1} parent=1 // pred_region
      _
    $region17: #{tpu_custom_call.1} parent=1 // pred_fallthru
      _
    // Predicated region
    $region18: #{tpu_custom_call.1} parent=1 // pred_check
      _
    $region19: #{tpu_custom_call.1} parent=1 // pred_check_branch
      %31 = sbr.rel (0) target = $region21
    $region20: #{tpu_custom_call.1} parent=1 // pred_region
      _
    $region21: #{tpu_custom_call.1} parent=1 // pred_fallthru
      _
    // Predicated region
    $region22: #{tpu_custom_call.1} parent=1 // pred_check
      _
    $region23: #{tpu_custom_call.1} parent=1 // pred_check_branch
      %33 = sbr.rel (0) target = $region25
    $region24: #{tpu_custom_call.1} parent=1 // pred_region
      %34 = dma.done [#allocation3], 2560
    $region25: #{tpu_custom_call.1} parent=1 // pred_fallthru
      _
    %v36 = vld [vmem:[%s0] sm:$0xf]
    %v37 = vld [vmem:[#allocation2] sm:$0xf]
    %v38 = vld [vmem:[#allocation2 + $0x4] sm:$0xf]
    %v39 = vld [vmem:[#allocation2 + $0x8] sm:$0xf]
    %v40 = vld [vmem:[#allocation2 + $0xc] sm:$0xf]
    %v41 = vld [vmem:[#allocation2 + $0x10] sm:$0xf]
    %v42 = vld [vmem:[#allocation2 + $0x14] sm:$0xf]
    %v43 = vld [vmem:[#allocation2 + $0x18] sm:$0xf]
    %v44 = vld [vmem:[#allocation2 + $0x1c] sm:$0xf]
    %v45 = vld [vmem:[#allocation2 + $0x20] sm:$0xf]
    %v46 = vld [vmem:[#allocation2 + $0x24] sm:$0xf]
    %v47 = vld [vmem:[%s2] sm:$0x1]
    %v49 = vlaneseq
    %v50 = vshrl.u32 %v49, 7
    %v51 = vsub.s32 0, %v50
    %v52 = vrot.slane %v47, %v51
    %v64 = vunpack.c.l.b16 %v37
    %v65 = vunpack.c.l.b16 %v38
    %v66 = vunpack.c.l.b16 %v39
    %v67 = vunpack.c.l.b16 %v40
    %v68 = vunpack.c.l.b16 %v41
    %v69 = vunpack.c.l.b16 %v42
    %v70 = vunpack.c.l.b16 %v43
    %v71 = vunpack.c.l.b16 %v44
    %v72 = vunpack.c.l.b16 %v45
    %v73 = vunpack.c.l.b16 %v46
    %v74 = vpack.c.b16 %v65, %v64
    %v75 = vpack.c.b16 %v67, %v66
    %v76 = vpack.c.b16 %v69, %v68
    %v77 = vpack.c.b16 %v71, %v70
    %v78 = vpack.c.b16 %v73, %v72
    %vm84 = vcmask 654336
    %v86 = vsel %vm84, %v36, 0
    %88 = vmatprep.subr.bf16.mxu0 0
    %89 = vmatpush1.bf16.msra.mxu0 0
    %90 = vmatprep.subr.bf16.mxu0 0
    %91 = vmatpush1.bf16.msra.mxu0 0
    %92 = vmatprep.subr.bf16.mxu0 0
    %93 = vmatpush1.bf16.msra.mxu0 0
    %94 = vmatprep.subr.bf16.mxu0 0
    %95 = vmatpush1.bf16.msra.mxu0 %v78
    %96 = vmatprep.subr.bf16.mxu0 0
    %97 = vmatpush1.bf16.msra.mxu0 %v77
    %98 = vmatprep.subr.bf16.mxu0 0
    %99 = vmatpush1.bf16.msra.mxu0 %v76
    %100 = vmatprep.subr.bf16.mxu0 0
    %101 = vmatpush1.bf16.msra.mxu0 %v75
    %102 = vmatprep.subr.bf16.mxu0 0
    %103 = vmatpush1.bf16.msra.mxu0 %v74
    %104 = vmatprep.subr.bf16.mxu0 0
    %105 = vmatpush2.bf16.msra.mxu0 0
    %106 = vmatprep.subr.bf16.mxu0 0
    %107 = vmatpush2.bf16.msra.mxu0 0
    %108 = vmatprep.subr.bf16.mxu0 0
    %109 = vmatpush2.bf16.msra.mxu0 0
    %110 = vmatprep.subr.bf16.mxu0 0
    %111 = vmatpush2.bf16.msra.mxu0 0
    %112 = vmatprep.subr.bf16.mxu0 0
    %113 = vmatpush2.bf16.msra.mxu0 0
    %114 = vmatprep.subr.bf16.mxu0 0
    %115 = vmatpush2.bf16.msra.mxu0 0
    %116 = vmatprep.subr.bf16.mxu0 0
    %117 = vmatpush2.bf16.msra.mxu0 0
    %118 = vmatprep.subr.bf16.mxu0 0
    %119 = vmatpush2.bf16.msra.mxu0 0
    %120 = vmatprep.mubr.bf16.mxu0 0
    %121 = vmatmul.mubr.bf16.gmra.mxu0 %v86
    %v122 = vpop.f32.mrf.mxu0
    %v123 = vadd.f32 %v52, %v122
    %v124 = vpop.f32.mrf.mxu0
    %v125 = vpop.f32.mrf.mxu0
    %v126 = vpop.f32.mrf.mxu0
    %127 = vdwg.mxu0
    %v128 = vmax.f32 %v123, 0.0
    %v129 = vpack.c.bf16 %v128, %v128
    %s130 = scalar_lea.vmem [#allocation2], 40
    %v131 = vld [vmem:[%s130] sm:$0xf]
    %v132 = vld [vmem:[%s130 + $0x4] sm:$0xf]
    %v133 = vld [vmem:[%s130 + $0x8] sm:$0xf]
    %v134 = vld [vmem:[%s130 + $0xc] sm:$0xf]
    %v135 = vld [vmem:[%s130 + $0x10] sm:$0xf]
    %v136 = vld [vmem:[%s130 + $0x14] sm:$0xf]
    %v137 = vld [vmem:[%s130 + $0x18] sm:$0xf]
    %v138 = vld [vmem:[%s130 + $0x1c] sm:$0xf]
    %v139 = vld [vmem:[%s130 + $0x20] sm:$0xf]
    %v140 = vld [vmem:[%s130 + $0x24] sm:$0xf]
    %s141 = scalar_lea.vmem %s2, 1
    %v142 = vld [vmem:[%s141] sm:$0x1]
    %v144 = vlaneseq
    %v145 = vshrl.u32 %v144, 7
    %v146 = vsub.s32 0, %v145
    %v147 = vrot.slane %v142, %v146
    %v159 = vunpack.c.l.b16 %v131
    %v160 = vunpack.c.l.b16 %v132
    %v161 = vunpack.c.l.b16 %v133
    %v162 = vunpack.c.l.b16 %v134
    %v163 = vunpack.c.l.b16 %v135
    %v164 = vunpack.c.l.b16 %v136
    %v165 = vunpack.c.l.b16 %v137
    %v166 = vunpack.c.l.b16 %v138
    %v167 = vunpack.c.l.b16 %v139
    %v168 = vunpack.c.l.b16 %v140
    %v169 = vpack.c.b16 %v160, %v159
    %v170 = vpack.c.b16 %v162, %v161
    %v171 = vpack.c.b16 %v164, %v163
    %v172 = vpack.c.b16 %v166, %v165
    %v173 = vpack.c.b16 %v168, %v167
    %v180 = vsel %vm84, %v129, 0
    %182 = vmatprep.subr.bf16.mxu0 0
    %183 = vmatpush1.bf16.msra.mxu0 0
    %184 = vmatprep.subr.bf16.mxu0 0
    %185 = vmatpush1.bf16.msra.mxu0 0
    %186 = vmatprep.subr.bf16.mxu0 0
    %187 = vmatpush1.bf16.msra.mxu0 0
    %188 = vmatprep.subr.bf16.mxu0 0
    %189 = vmatpush1.bf16.msra.mxu0 %v173
    %190 = vmatprep.subr.bf16.mxu0 0
    %191 = vmatpush1.bf16.msra.mxu0 %v172
    %192 = vmatprep.subr.bf16.mxu0 0
    %193 = vmatpush1.bf16.msra.mxu0 %v171
    %194 = vmatprep.subr.bf16.mxu0 0
    %195 = vmatpush1.bf16.msra.mxu0 %v170
    %196 = vmatprep.subr.bf16.mxu0 0
    %197 = vmatpush1.bf16.msra.mxu0 %v169
    %198 = vmatprep.subr.bf16.mxu0 0
    %199 = vmatpush2.bf16.msra.mxu0 0
    %200 = vmatprep.subr.bf16.mxu0 0
    %201 = vmatpush2.bf16.msra.mxu0 0
    %202 = vmatprep.subr.bf16.mxu0 0
    %203 = vmatpush2.bf16.msra.mxu0 0
    %204 = vmatprep.subr.bf16.mxu0 0
    %205 = vmatpush2.bf16.msra.mxu0 0
    %206 = vmatprep.subr.bf16.mxu0 0
    %207 = vmatpush2.bf16.msra.mxu0 0
    %208 = vmatprep.subr.bf16.mxu0 0
    %209 = vmatpush2.bf16.msra.mxu0 0
    %210 = vmatprep.subr.bf16.mxu0 0
    %211 = vmatpush2.bf16.msra.mxu0 0
    %212 = vmatprep.subr.bf16.mxu0 0
    %213 = vmatpush2.bf16.msra.mxu0 0
    %214 = vmatprep.mubr.bf16.mxu0 0
    %215 = vmatmul.mubr.bf16.gmra.mxu0 %v180
    %v216 = vpop.f32.mrf.mxu0
    %v217 = vadd.f32 %v147, %v216
    %v218 = vpop.f32.mrf.mxu0
    %v219 = vpop.f32.mrf.mxu0
    %v220 = vpop.f32.mrf.mxu0
    %221 = vdwg.mxu0
    %v222 = vmax.f32 %v217, 0.0
    %v223 = vpack.c.bf16 %v222, %v222
    %s224 = scalar_lea.vmem [#allocation2], 80
    %v225 = vld [vmem:[%s224] sm:$0xf]
    %v226 = vld [vmem:[%s224 + $0x4] sm:$0xf]
    %v227 = vld [vmem:[%s224 + $0x8] sm:$0xf]
    %v228 = vld [vmem:[%s224 + $0xc] sm:$0xf]
    %v229 = vld [vmem:[%s224 + $0x10] sm:$0xf]
    %v230 = vld [vmem:[%s224 + $0x14] sm:$0xf]
    %v231 = vld [vmem:[%s224 + $0x18] sm:$0xf]
    %v232 = vld [vmem:[%s224 + $0x1c] sm:$0xf]
    %v233 = vld [vmem:[%s224 + $0x20] sm:$0xf]
    %v234 = vld [vmem:[%s224 + $0x24] sm:$0xf]
    %s235 = scalar_lea.vmem %s2, 2
    %v236 = vld [vmem:[%s235] sm:$0x1]
    %v238 = vlaneseq
    %v239 = vshrl.u32 %v238, 7
    %v240 = vsub.s32 0, %v239
    %v241 = vrot.slane %v236, %v240
    %v253 = vunpack.c.l.b16 %v225
    %v254 = vunpack.c.l.b16 %v226
    %v255 = vunpack.c.l.b16 %v227
    %v256 = vunpack.c.l.b16 %v228
    %v257 = vunpack.c.l.b16 %v229
    %v258 = vunpack.c.l.b16 %v230
    %v259 = vunpack.c.l.b16 %v231
    %v260 = vunpack.c.l.b16 %v232
    %v261 = vunpack.c.l.b16 %v233
    %v262 = vunpack.c.l.b16 %v234
    %v263 = vpack.c.b16 %v254, %v253
    %v264 = vpack.c.b16 %v256, %v255
    %v265 = vpack.c.b16 %v258, %v257
    %v266 = vpack.c.b16 %v260, %v259
    %v267 = vpack.c.b16 %v262, %v261
    %v274 = vsel %vm84, %v223, 0
    %276 = vmatprep.subr.bf16.mxu0 0
    %277 = vmatpush1.bf16.msra.mxu0 0
    %278 = vmatprep.subr.bf16.mxu0 0
    %279 = vmatpush1.bf16.msra.mxu0 0
    %280 = vmatprep.subr.bf16.mxu0 0
    %281 = vmatpush1.bf16.msra.mxu0 0
    %282 = vmatprep.subr.bf16.mxu0 0
    %283 = vmatpush1.bf16.msra.mxu0 %v267
    %284 = vmatprep.subr.bf16.mxu0 0
    %285 = vmatpush1.bf16.msra.mxu0 %v266
    %286 = vmatprep.subr.bf16.mxu0 0
    %287 = vmatpush1.bf16.msra.mxu0 %v265
    %288 = vmatprep.subr.bf16.mxu0 0
    %289 = vmatpush1.bf16.msra.mxu0 %v264
    %290 = vmatprep.subr.bf16.mxu0 0
    %291 = vmatpush1.bf16.msra.mxu0 %v263
    %292 = vmatprep.subr.bf16.mxu0 0
    %293 = vmatpush2.bf16.msra.mxu0 0
    %294 = vmatprep.subr.bf16.mxu0 0
    %295 = vmatpush2.bf16.msra.mxu0 0
    %296 = vmatprep.subr.bf16.mxu0 0
    %297 = vmatpush2.bf16.msra.mxu0 0
    %298 = vmatprep.subr.bf16.mxu0 0
    %299 = vmatpush2.bf16.msra.mxu0 0
    %300 = vmatprep.subr.bf16.mxu0 0
    %301 = vmatpush2.bf16.msra.mxu0 0
    %302 = vmatprep.subr.bf16.mxu0 0
    %303 = vmatpush2.bf16.msra.mxu0 0
    %304 = vmatprep.subr.bf16.mxu0 0
    %305 = vmatpush2.bf16.msra.mxu0 0
    %306 = vmatprep.subr.bf16.mxu0 0
    %307 = vmatpush2.bf16.msra.mxu0 0
    %308 = vmatprep.mubr.bf16.mxu0 0
    %309 = vmatmul.mubr.bf16.gmra.mxu0 %v274
    %v310 = vpop.f32.mrf.mxu0
    %v311 = vadd.f32 %v241, %v310
    %v312 = vpop.f32.mrf.mxu0
    %v313 = vpop.f32.mrf.mxu0
    %v314 = vpop.f32.mrf.mxu0
    %315 = vdwg.mxu0
    %v316 = vmax.f32 %v311, 0.0
    %v317 = vpack.c.bf16 %v316, %v316
    %s318 = scalar_lea.vmem [#allocation2], 120
    %v319 = vld [vmem:[%s318] sm:$0xf]
    %v320 = vld [vmem:[%s318 + $0x4] sm:$0xf]
    %v321 = vld [vmem:[%s318 + $0x8] sm:$0xf]
    %v322 = vld [vmem:[%s318 + $0xc] sm:$0xf]
    %v323 = vld [vmem:[%s318 + $0x10] sm:$0xf]
    %v324 = vld [vmem:[%s318 + $0x14] sm:$0xf]
    %v325 = vld [vmem:[%s318 + $0x18] sm:$0xf]
    %v326 = vld [vmem:[%s318 + $0x1c] sm:$0xf]
    %v327 = vld [vmem:[%s318 + $0x20] sm:$0xf]
    %v328 = vld [vmem:[%s318 + $0x24] sm:$0xf]
    %s329 = scalar_lea.vmem %s2, 3
    %v330 = vld [vmem:[%s329] sm:$0x1]
    %v332 = vlaneseq
    %v333 = vshrl.u32 %v332, 7
    %v334 = vsub.s32 0, %v333
    %v335 = vrot.slane %v330, %v334
    %v347 = vunpack.c.l.b16 %v319
    %v348 = vunpack.c.l.b16 %v320
    %v349 = vunpack.c.l.b16 %v321
    %v350 = vunpack.c.l.b16 %v322
    %v351 = vunpack.c.l.b16 %v323
    %v352 = vunpack.c.l.b16 %v324
    %v353 = vunpack.c.l.b16 %v325
    %v354 = vunpack.c.l.b16 %v326
    %v355 = vunpack.c.l.b16 %v327
    %v356 = vunpack.c.l.b16 %v328
    %v357 = vpack.c.b16 %v348, %v347
    %v358 = vpack.c.b16 %v350, %v349
    %v359 = vpack.c.b16 %v352, %v351
    %v360 = vpack.c.b16 %v354, %v353
    %v361 = vpack.c.b16 %v356, %v355
    %v368 = vsel %vm84, %v317, 0
    %370 = vmatprep.subr.bf16.mxu0 0
    %371 = vmatpush1.bf16.msra.mxu0 0
    %372 = vmatprep.subr.bf16.mxu0 0
    %373 = vmatpush1.bf16.msra.mxu0 0
    %374 = vmatprep.subr.bf16.mxu0 0
    %375 = vmatpush1.bf16.msra.mxu0 0
    %376 = vmatprep.subr.bf16.mxu0 0
    %377 = vmatpush1.bf16.msra.mxu0 %v361
    %378 = vmatprep.subr.bf16.mxu0 0
    %379 = vmatpush1.bf16.msra.mxu0 %v360
    %380 = vmatprep.subr.bf16.mxu0 0
    %381 = vmatpush1.bf16.msra.mxu0 %v359
    %382 = vmatprep.subr.bf16.mxu0 0
    %383 = vmatpush1.bf16.msra.mxu0 %v358
    %384 = vmatprep.subr.bf16.mxu0 0
    %385 = vmatpush1.bf16.msra.mxu0 %v357
    %386 = vmatprep.subr.bf16.mxu0 0
    %387 = vmatpush2.bf16.msra.mxu0 0
    %388 = vmatprep.subr.bf16.mxu0 0
    %389 = vmatpush2.bf16.msra.mxu0 0
    %390 = vmatprep.subr.bf16.mxu0 0
    %391 = vmatpush2.bf16.msra.mxu0 0
    %392 = vmatprep.subr.bf16.mxu0 0
    %393 = vmatpush2.bf16.msra.mxu0 0
    %394 = vmatprep.subr.bf16.mxu0 0
    %395 = vmatpush2.bf16.msra.mxu0 0
    %396 = vmatprep.subr.bf16.mxu0 0
    %397 = vmatpush2.bf16.msra.mxu0 0
    %398 = vmatprep.subr.bf16.mxu0 0
    %399 = vmatpush2.bf16.msra.mxu0 0
    %400 = vmatprep.subr.bf16.mxu0 0
    %401 = vmatpush2.bf16.msra.mxu0 0
    %402 = vmatprep.mubr.bf16.mxu0 0
    %403 = vmatmul.mubr.bf16.gmra.mxu0 %v368
    %v404 = vpop.f32.mrf.mxu0
    %v405 = vadd.f32 %v335, %v404
    %v406 = vpop.f32.mrf.mxu0
    %v407 = vpop.f32.mrf.mxu0
    %v408 = vpop.f32.mrf.mxu0
    %409 = vdwg.mxu0
    %v410 = vmax.f32 %v405, 0.0
    %v411 = vpack.c.bf16 %v410, %v410
    %v412 = vld [vmem:[%s3] sm:$0xf]
    %v413 = vld [vmem:[%s3 + $0x4] sm:$0xf]
    %v414 = vld [vmem:[%s3 + $0x8] sm:$0xf]
    %v415 = vld [vmem:[%s3 + $0xc] sm:$0xf]
    %v416 = vld [vmem:[%s3 + $0x10] sm:$0xf]
    %v417 = vld [vmem:[%s3 + $0x14] sm:$0xf]
    %v418 = vld [vmem:[%s3 + $0x18] sm:$0xf]
    %v419 = vld [vmem:[%s3 + $0x1c] sm:$0xf]
    %v420 = vld [vmem:[%s3 + $0x20] sm:$0xf]
    %v421 = vld [vmem:[%s3 + $0x24] sm:$0xf]
    %v422 = vld [vmem:[%s4] sm:$0x1]
    %v424 = vlaneseq
    %v425 = vshrl.u32 %v424, 7
    %v426 = vsub.s32 0, %v425
    %v427 = vrot.slane %v422, %v426
    %v439 = vunpack.c.l.b16 %v412
    %v440 = vunpack.c.l.b16 %v413
    %v441 = vunpack.c.l.b16 %v414
    %v442 = vunpack.c.l.b16 %v415
    %v443 = vunpack.c.l.b16 %v416
    %v444 = vunpack.c.l.b16 %v417
    %v445 = vunpack.c.l.b16 %v418
    %v446 = vunpack.c.l.b16 %v419
    %v447 = vunpack.c.l.b16 %v420
    %v448 = vunpack.c.l.b16 %v421
    %v449 = vpack.c.b16 %v440, %v439
    %v450 = vpack.c.b16 %v442, %v441
    %v451 = vpack.c.b16 %v444, %v443
    %v452 = vpack.c.b16 %v446, %v445
    %v453 = vpack.c.b16 %v448, %v447
    %v460 = vsel %vm84, %v411, 0
    %462 = vmatprep.subr.bf16.mxu0 0
    %463 = vmatpush1.bf16.msra.mxu0 0
    %464 = vmatprep.subr.bf16.mxu0 0
    %465 = vmatpush1.bf16.msra.mxu0 0
    %466 = vmatprep.subr.bf16.mxu0 0
    %467 = vmatpush1.bf16.msra.mxu0 0
    %468 = vmatprep.subr.bf16.mxu0 0
    %469 = vmatpush1.bf16.msra.mxu0 %v453
    %470 = vmatprep.subr.bf16.mxu0 0
    %471 = vmatpush1.bf16.msra.mxu0 %v452
    %472 = vmatprep.subr.bf16.mxu0 0
    %473 = vmatpush1.bf16.msra.mxu0 %v451
    %474 = vmatprep.subr.bf16.mxu0 0
    %475 = vmatpush1.bf16.msra.mxu0 %v450
    %476 = vmatprep.subr.bf16.mxu0 0
    %477 = vmatpush1.bf16.msra.mxu0 %v449
    %478 = vmatprep.subr.bf16.mxu0 0
    %479 = vmatpush2.bf16.msra.mxu0 0
    %480 = vmatprep.subr.bf16.mxu0 0
    %481 = vmatpush2.bf16.msra.mxu0 0
    %482 = vmatprep.subr.bf16.mxu0 0
    %483 = vmatpush2.bf16.msra.mxu0 0
    %484 = vmatprep.subr.bf16.mxu0 0
    %485 = vmatpush2.bf16.msra.mxu0 0
    %486 = vmatprep.subr.bf16.mxu0 0
    %487 = vmatpush2.bf16.msra.mxu0 0
    %488 = vmatprep.subr.bf16.mxu0 0
    %489 = vmatpush2.bf16.msra.mxu0 0
    %490 = vmatprep.subr.bf16.mxu0 0
    %491 = vmatpush2.bf16.msra.mxu0 0
    %492 = vmatprep.subr.bf16.mxu0 0
    %493 = vmatpush2.bf16.msra.mxu0 0
    %494 = vmatprep.mubr.bf16.mxu0 0
    %495 = vmatmul.mubr.bf16.gmra.mxu0 %v460
    %v496 = vpop.f32.mrf.mxu0
    %v497 = vadd.f32 %v427, %v496
    %v498 = vpop.f32.mrf.mxu0
    %v499 = vpop.f32.mrf.mxu0
    %v500 = vpop.f32.mrf.mxu0
    %501 = vdwg.mxu0
    %vm502 = vcmask 130048
    %503 = vst.msk [vmem:[#allocation5] sm:$0xff] %vm502, %v497
    // Predicated region
    $region26: #{tpu_custom_call.1} parent=1 // pred_check
      _
    $region27: #{tpu_custom_call.1} parent=1 // pred_check_branch
      %505 = sbr.rel (0) target = $region29
    $region28: #{tpu_custom_call.1} parent=1 // pred_region
      %s507 = ssub.s32 128, 128
      %508 = vsyncadd [#allocation4], %s507
      %s510 = sshll.u32 [#allocation5], 4
      %s511 = int_to_ptr.vmem [resolvable:$true] %s510
      %513 = dma.vmem_to_hbm [thread:$0]  %s511, 128, %s5, [#allocation4]
    $region29: #{tpu_custom_call.1} parent=1 // pred_fallthru
      _
    // Predicated region
    $region30: #{tpu_custom_call.1} parent=1 // pred_check
      _
    $region31: #{tpu_custom_call.1} parent=1 // pred_check_branch
      %515 = sbr.rel (0) target = $region33
    $region32: #{tpu_custom_call.1} parent=1 // pred_region
      %516 = dma.done [#allocation4], 128
    $region33: #{tpu_custom_call.1} parent=1 // pred_fallthru
      _
    %517 = vsyncpa [#allocation3], 1
    %518 = vsyncpa [#allocation4], 1

</llo_original>
